<compile_context>
chip_gen: v7x
topology: tpu7x:2x2x1
jax: 0.10.0
libtpu: 0.0.40
codegen_flags: <defaults>
</compile_context>

<pallas_src>
import jax
import jax.numpy as jnp
from jax import lax
from jax.experimental import pallas as pl
from jax.experimental.pallas import tpu as pltpu


def _vmem_capacity_bytes():
    """Physical per-core VMEM; conservative 64 MiB fallback (v7x-safe)."""
    try:
        return int(pltpu.get_tpu_info().vmem_capacity_bytes)
    except Exception:
        return 64 << 20


# ------------------------------------------------------- streaming kernel ---
def pool_kernel(hs_ref, mixw_ref, part_ref):
    """ScalarMix + sequence-mean partial accumulation over one sequence tile.

    hs_ref   : VMEM [L, B, tS, H]  hidden-state tile
    mixw_ref : SMEM [2, L]         softmax(mix)*gamma / S   (row0=diff, row1=time)
    part_ref : VMEM [2, B, H]      per-split partial pooled accumulator (output)
    """
    s_idx = pl.program_id(1)
    L = hs_ref.shape[0]
    B, H = part_ref.shape[1], part_ref.shape[2]

    @pl.when(s_idx == 0)
    def _init():
        part_ref[...] = jnp.zeros_like(part_ref)

    def body(l, carry):
        pd, pt = carry
        ssum = jnp.sum(hs_ref[l].astype(jnp.float32), axis=1)        # [B, H]
        pd = pd + ssum * mixw_ref[0, l]
        pt = pt + ssum * mixw_ref[1, l]
        return pd, pt

    init = (jnp.zeros((B, H), jnp.float32), jnp.zeros((B, H), jnp.float32))
    # Bounded body keeps live ranges small at DeBERTa depths (L=13/25).
    part_d, part_t = lax.fori_loop(0, L, body, init,
                                   unroll=True if L <= 8 else 2)

    part_ref[0] = part_ref[0] + part_d
    part_ref[1] = part_ref[1] + part_t


# ------------------------------------------------------------ head kernel ---
def head_kernel(part_ref, acoef_ref, qcoef_ref, b2_ref, w1_ref, b1_ref, w2_ref,
                out_ref):
    """Combine split partials and run both regression heads (fused).

    part_ref : VMEM [n_split, 2, B, H]   partial pooled means
    acoef_ref: SMEM [2, 6]               Rational numerator coefficients
    qcoef_ref: SMEM [2, 4]               Rational denominator coefficients
    b2_ref   : SMEM [2]                  final-linear bias per head
    w1_ref   : VMEM [2, H, H]            first-linear weights (stacked heads)
    b1_ref   : VMEM [2, 1, H]            first-linear biases
    w2_ref   : VMEM [2, 1, H]            second-linear weight rows
    out_ref  : VMEM [B, 2]
    """
    pooled = jnp.sum(part_ref[...], axis=0)                          # [2, B, H]

    # Both heads' Linear(H, H) as one batched MXU call.
    h = jnp.einsum("nbh,nhk->nbk", pooled, w1_ref[...],
                   preferred_element_type=jnp.float32)                # [2, B, H]
    h = h + b1_ref[...]

    # --- dropout (eval mode => identity) ---

    for hd in range(2):
        x = h[hd]                                                     # [B, H]
        a0 = acoef_ref[hd, 0]; a1 = acoef_ref[hd, 1]; a2 = acoef_ref[hd, 2]
        a3 = acoef_ref[hd, 3]; a4 = acoef_ref[hd, 4]; a5 = acoef_ref[hd, 5]
        q0 = qcoef_ref[hd, 0]; q1 = qcoef_ref[hd, 1]
        q2 = qcoef_ref[hd, 2]; q3 = qcoef_ref[hd, 3]
        # Rational activation, Pade [5/4], version A:
        #   P(x) / (1 + |b0 x + b1 x^2 + b2 x^3 + b3 x^4|)
        num = a0 + x * (a1 + x * (a2 + x * (a3 + x * (a4 + x * a5))))
        den = 1.0 + jnp.abs(x * (q0 + x * (q1 + x * (q2 + x * q3))))
        r = num / den                                                 # [B, H]
        # Linear(H, 1): dot with weight row + bias; write straight into out slice.
        col = jnp.sum(r * w2_ref[hd, 0, :], axis=-1, keepdims=True) + b2_ref[hd]
        out_ref[:, hd:hd + 1] = col


# ----------------------------------------------------------------- wrapper ---
def scoring_forward(hidden_states, params, *, max_seq_tile=4096, n_split=2):
    """hidden_states: [L, B, S, H] (f32 or bf16). Returns [B, 2] = (difficulty, time)."""
    L, B, S, H = hidden_states.shape

    # --- ScalarMix parameter glue: softmax over layer scalars, fold gamma,
    #     pre-scale by 1/S so the streamed sum is directly the sequence mean. ---
    def fold(scalars, gamma):
        return jax.nn.softmax(scalars) * gamma

    mixw = jnp.stack([fold(params["mix_s_diff"], params["mix_g_diff"]),
                      fold(params["mix_s_time"], params["mix_g_time"])], axis=0)
    mixw = (mixw / jnp.float32(S)).astype(jnp.float32)                       # [2, L]
    acoef = jnp.stack([params["rat_a_diff"], params["rat_a_time"]], axis=0)  # [2, 6]
    qcoef = jnp.stack([params["rat_q_diff"], params["rat_q_time"]], axis=0)  # [2, 4]
    b2 = jnp.stack([params["b2_diff"], params["b2_time"]], axis=0)           # [2]
    w1 = jnp.stack([params["w1_diff"], params["w1_time"]], axis=0)           # [2, H, H]
    b1 = jnp.stack([params["b1_diff"], params["b1_time"]], axis=0).reshape(2, 1, H)
    w2 = jnp.stack([params["w2_diff"], params["w2_time"]], axis=0).reshape(2, 1, H)

    # --- generation-aware sizing ---
    vmem_cap = _vmem_capacity_bytes()
    # 128 MiB chips (v5e/v6e): big tiles; 64 MiB (v7x): ~18 MiB tiles.
    target_tile_bytes = (28 << 20) if vmem_cap >= (100 << 20) else (18 << 20)

    itemsize = hidden_states.dtype.itemsize
    sub = {4: 8, 2: 16, 1: 32}.get(itemsize, 8)     # dtype-specific sublane multiple
    bytes_per_s = max(L * B * H * itemsize, 1)

    n_split = max(1, int(n_split))
    tS_cap = max(sub, (max_seq_tile // sub) * sub)
    tS = max(sub, min(((target_tile_bytes // bytes_per_s) // sub) * sub, tS_cap))
    per_split = -(-S // n_split)                    # ceil(S / n_split)
    per_split = -(-per_split // sub) * sub          # round up to sublane multiple
    tS = min(tS, per_split)

    chunk = tS * n_split
    s_pad = -(-S // chunk) * chunk
    if s_pad != S:
        # Zero rows don't affect the sum; the mean uses the original S via mixw.
        hidden_states = jnp.pad(
            hidden_states, ((0, 0), (0, 0), (0, s_pad - S), (0, 0)))
    tiles_per_split = s_pad // chunk

    smem = pltpu.MemorySpace.SMEM
    vspace = pltpu.MemorySpace.VMEM

    # --- VMEM budgets: honest accounting + 15% physical headroom. ---
    tile_bytes = L * B * tS * H * itemsize
    part_blk_bytes = 2 * B * H * 4
    stream_need = 2 * tile_bytes + 2 * part_blk_bytes + (4 << 20)
    stream_vmem = int(min(max(stream_need, 32 << 20), int(vmem_cap * 0.85)))

    head_need = (2 * H * H * 4 + n_split * 2 * B * H * 4
                 + 4 * 2 * B * H * 4 + (2 << 20))
    head_vmem = int(min(max(head_need, 16 << 20), int(vmem_cap * 0.85)))

    # --------------------- kernel 1: streaming pooled partials ---------------
    partial = pl.pallas_call(
        pool_kernel,
        out_shape=jax.ShapeDtypeStruct((n_split, 2, B, H), jnp.float32),
        grid_spec=pltpu.PrefetchScalarGridSpec(
            num_scalar_prefetch=0,
            grid=(n_split, tiles_per_split),
            in_specs=[
                pl.BlockSpec((L, B, tS, H),
                             lambda c, s: (0, 0, c * tiles_per_split + s, 0)),
                pl.BlockSpec((2, L), lambda c, s: (0, 0), memory_space=smem),
            ],
            out_specs=pl.BlockSpec((None, 2, B, H), lambda c, s: (c, 0, 0, 0)),
        ),
        compiler_params=pltpu.CompilerParams(
            dimension_semantics=("parallel", "arbitrary"),
            vmem_limit_bytes=stream_vmem),
    )(hidden_states, mixw)

    # --------------------- kernel 2: tiny head epilogue -----------------------
    out = pl.pallas_call(
        head_kernel,
        out_shape=jax.ShapeDtypeStruct((B, 2), jnp.float32),
        in_specs=[
            pl.BlockSpec(memory_space=vspace),    # partial pooled sums
            pl.BlockSpec(memory_space=smem),      # Rational numerator coeffs
            pl.BlockSpec(memory_space=smem),      # Rational denominator coeffs
            pl.BlockSpec(memory_space=smem),      # final bias
            pl.BlockSpec(memory_space=vspace),    # w1 [2,H,H]
            pl.BlockSpec(memory_space=vspace),    # b1 [2,1,H]
            pl.BlockSpec(memory_space=vspace),    # w2 [2,1,H]
        ],
        out_specs=pl.BlockSpec(memory_space=vspace),
        compiler_params=pltpu.CompilerParams(vmem_limit_bytes=head_vmem),
    )(partial, acoef, qcoef, b2, w1, b1, w2)

    return out


# --------------------------------------------------------- pure-JAX reference
def scoring_reference(hidden_states, params):
    def fold(scalars, gamma):
        return jax.nn.softmax(scalars) * gamma

    def head(w, W1, b1, a, q, W2, b2):
        mixed = jnp.einsum("l,lbsh->bsh", w, hidden_states.astype(jnp.float32))
        pooled = jnp.mean(mixed, axis=1)
        h = pooled @ W1 + b1
        num = a[0] + h * (a[1] + h * (a[2] + h * (a[3] + h * (a[4] + h * a[5]))))
        den = 1.0 + jnp.abs(h * (q[0] + h * (q[1] + h * (q[2] + h * q[3]))))
        r = num / den
        return jnp.sum(r * W2, axis=-1, keepdims=True) + b2

    d = head(fold(params["mix_s_diff"], params["mix_g_diff"]),
             params["w1_diff"], params["b1_diff"], params["rat_a_diff"],
             params["rat_q_diff"], params["w2_diff"], params["b2_diff"])
    t = head(fold(params["mix_s_time"], params["mix_g_time"]),
             params["w1_time"], params["b1_time"], params["rat_a_time"],
             params["rat_q_time"], params["w2_time"], params["b2_time"])
    return jnp.concatenate([d, t], axis=-1)


# ---------------------------------------------------------------- param init
def init_params(key, L, H):
    ks = jax.random.split(key, 8)
    # Rational() default: degree (5,4), version A, initialized to approximate
    # leaky_relu (deterministic constants).
    rat_a = jnp.array([0.02979246, 0.61837738, 2.32335207,
                       3.05202660, 1.48548002, 0.25103717], jnp.float32)
    rat_q = jnp.array([1.14201226, 4.39322834, 0.87154450, 0.34720652], jnp.float32)
    return {
        # ScalarMix: per-layer scalars init 0, gamma init 1.
        "mix_s_diff": jnp.zeros((L,), jnp.float32), "mix_g_diff": jnp.float32(1.0),
        "mix_s_time": jnp.zeros((L,), jnp.float32), "mix_g_time": jnp.float32(1.0),
        # Regression heads.
        "w1_diff": 0.02 * jax.random.normal(ks[0], (H, H), jnp.float32),
        "b1_diff": 0.01 * jax.random.normal(ks[1], (H,), jnp.float32),
        "w2_diff": 0.02 * jax.random.normal(ks[2], (H,), jnp.float32),
        "b2_diff": jnp.float32(0.1),
        "w1_time": 0.02 * jax.random.normal(ks[3], (H, H), jnp.float32),
        "b1_time": 0.01 * jax.random.normal(ks[4], (H,), jnp.float32),
        "w2_time": 0.02 * jax.random.normal(ks[5], (H,), jnp.float32),
        "b2_time": jnp.float32(-0.1),
        # Rational activation coefficients (shared deterministic init per head).
        "rat_a_diff": rat_a, "rat_q_diff": rat_q,
        "rat_a_time": rat_a, "rat_q_time": rat_q,
    }


if __name__ == "__main__":
    # Small synthetic config: 4 hidden layers (+ embeddings) -> L=5, B=2, S=48, H=32.
    # bf16 hidden states (stand-in for the LM's bf16 output) exercise the
    # half-width streaming path; max_seq_tile=16 forces multiple sequence tiles
    # per split, two splits, and the zero-padding path (48 -> 64, mean still /48).
    L, B, S, H = 5, 2, 48, 32
    key = jax.random.PRNGKey(0)
    k_hs, k_p = jax.random.split(key)

    hidden_states = jax.random.normal(k_hs, (L, B, S, H), jnp.float32)
    hidden_states = hidden_states.astype(jnp.bfloat16)
    params = init_params(k_p, L, H)

    out = scoring_forward(hidden_states, params, max_seq_tile=16, n_split=2)
    out = jax.block_until_ready(out)

    ref = scoring_reference(hidden_states, params)
    assert out.shape == (B, 2)
    assert jnp.allclose(out, ref, rtol=1e-4, atol=1e-4), (out, ref)

    print("KERNEL_OK")
</pallas_src>

<mosaic_0001>
module attributes {stable_mosaic.version = 11 : i64} {
  func.func @pool_kernel(%arg0: i32, %arg1: i32, %arg2: memref<5x2x16x32xbf16, #tpu.memory_space<vmem>>, %arg3: memref<2x5xf32, #tpu.memory_space<smem>>, %arg4: memref<1x2x2x32xf32, #tpu.memory_space<vmem>>) attributes {dimension_semantics = [#tpu.dimension_semantics<parallel>, #tpu.dimension_semantics<arbitrary>], iteration_bounds = array<i64: 2, 2>, scalar_prefetch = 0 : i64, scratch_operands = 0 : i64, tpu.core_type = #tpu.core_type<tc>, window_params = [{transform_indices = @transform_0, window_bounds = array<i64: 5, 2, 16, 32>}, {transform_indices = @transform_1, window_bounds = array<i64: 2, 5>}, {transform_indices = @transform_2, window_bounds = array<i64: 1, 2, 2, 32>}]} {
    %c0_i32 = arith.constant 0 : i32
    %0 = arith.cmpi eq, %arg1, %c0_i32 : i32
    %1 = arith.extui %0 : i1 to i32
    %c0_i32_0 = arith.constant 0 : i32
    %2 = arith.cmpi ne, %1, %c0_i32_0 : i32
    scf.if %2 {
      %cst_47 = arith.constant 0.000000e+00 : f32
      %92 = vector.broadcast %cst_47 : f32 to vector<2x2x32xf32>
      %c0_48 = arith.constant 0 : index
      %c0_49 = arith.constant 0 : index
      %c0_50 = arith.constant 0 : index
      %c0_51 = arith.constant 0 : index
      %93 = vector.load %arg4[%c0_48, %c0_49, %c0_50, %c0_51] : memref<1x2x2x32xf32, #tpu.memory_space<vmem>>, vector<1x2x2x32xf32>
      %94 = vector.shape_cast %93 : vector<1x2x2x32xf32> to vector<2x2x32xf32>
      %95 = vector.shape_cast %92 : vector<2x2x32xf32> to vector<1x2x2x32xf32>
      tpu.vector_store %arg4[%c0_48, %c0_49, %c0_50, %c0_51], %95 {strides = array<i32>} : memref<1x2x2x32xf32, #tpu.memory_space<vmem>>, vector<1x2x2x32xf32>,
    } else {
    }
    %cst = arith.constant 0.000000e+00 : f32
    %3 = vector.broadcast %cst : f32 to vector<2x32xf32>
    %cst_1 = arith.constant 0.000000e+00 : f32
    %4 = vector.broadcast %cst_1 : f32 to vector<2x32xf32>
    %c0_i32_2 = arith.constant 0 : i32
    %5 = arith.index_cast %c0_i32_2 : i32 to index
    %c0 = arith.constant 0 : index
    %c0_3 = arith.constant 0 : index
    %c0_4 = arith.constant 0 : index
    %6 = vector.load %arg2[%5, %c0, %c0_3, %c0_4] : memref<5x2x16x32xbf16, #tpu.memory_space<vmem>>, vector<1x2x16x32xbf16>
    %7 = vector.shape_cast %6 : vector<1x2x16x32xbf16> to vector<2x16x32xbf16>
    %8 = arith.extf %7 : vector<2x16x32xbf16> to vector<2x16x32xf32>
    %cst_5 = arith.constant dense<0.000000e+00> : vector<2x32xf32>
    %9 = vector.multi_reduction <add>, %8, %cst_5 [1] : vector<2x16x32xf32> to vector<2x32xf32>
    %c0_6 = arith.constant 0 : index
    %10 = arith.index_cast %c0_i32_2 : i32 to index
    %11 = memref.load %arg3[%c0_6, %10] : memref<2x5xf32, #tpu.memory_space<smem>>
    %12 = vector.broadcast %11 : f32 to vector<2x32xf32>
    %13 = arith.mulf %9, %12 : vector<2x32xf32>
    %14 = arith.addf %3, %13 : vector<2x32xf32>
    %c1 = arith.constant 1 : index
    %15 = arith.index_cast %c0_i32_2 : i32 to index
    %16 = memref.load %arg3[%c1, %15] : memref<2x5xf32, #tpu.memory_space<smem>>
    %17 = vector.broadcast %16 : f32 to vector<2x32xf32>
    %18 = arith.mulf %9, %17 : vector<2x32xf32>
    %19 = arith.addf %4, %18 : vector<2x32xf32>
    %c1_i32 = arith.constant 1 : i32
    %20 = arith.index_cast %c1_i32 : i32 to index
    %c0_7 = arith.constant 0 : index
    %c0_8 = arith.constant 0 : index
    %c0_9 = arith.constant 0 : index
    %21 = vector.load %arg2[%20, %c0_7, %c0_8, %c0_9] : memref<5x2x16x32xbf16, #tpu.memory_space<vmem>>, vector<1x2x16x32xbf16>
    %22 = vector.shape_cast %21 : vector<1x2x16x32xbf16> to vector<2x16x32xbf16>
    %23 = arith.extf %22 : vector<2x16x32xbf16> to vector<2x16x32xf32>
    %cst_10 = arith.constant dense<0.000000e+00> : vector<2x32xf32>
    %24 = vector.multi_reduction <add>, %23, %cst_10 [1] : vector<2x16x32xf32> to vector<2x32xf32>
    %c0_11 = arith.constant 0 : index
    %25 = arith.index_cast %c1_i32 : i32 to index
    %26 = memref.load %arg3[%c0_11, %25] : memref<2x5xf32, #tpu.memory_space<smem>>
    %27 = vector.broadcast %26 : f32 to vector<2x32xf32>
    %28 = arith.mulf %24, %27 : vector<2x32xf32>
    %29 = arith.addf %14, %28 : vector<2x32xf32>
    %c1_12 = arith.constant 1 : index
    %30 = arith.index_cast %c1_i32 : i32 to index
    %31 = memref.load %arg3[%c1_12, %30] : memref<2x5xf32, #tpu.memory_space<smem>>
    %32 = vector.broadcast %31 : f32 to vector<2x32xf32>
    %33 = arith.mulf %24, %32 : vector<2x32xf32>
    %34 = arith.addf %19, %33 : vector<2x32xf32>
    %c2_i32 = arith.constant 2 : i32
    %35 = arith.index_cast %c2_i32 : i32 to index
    %c0_13 = arith.constant 0 : index
    %c0_14 = arith.constant 0 : index
    %c0_15 = arith.constant 0 : index
    %36 = vector.load %arg2[%35, %c0_13, %c0_14, %c0_15] : memref<5x2x16x32xbf16, #tpu.memory_space<vmem>>, vector<1x2x16x32xbf16>
    %37 = vector.shape_cast %36 : vector<1x2x16x32xbf16> to vector<2x16x32xbf16>
    %38 = arith.extf %37 : vector<2x16x32xbf16> to vector<2x16x32xf32>
    %cst_16 = arith.constant dense<0.000000e+00> : vector<2x32xf32>
    %39 = vector.multi_reduction <add>, %38, %cst_16 [1] : vector<2x16x32xf32> to vector<2x32xf32>
    %c0_17 = arith.constant 0 : index
    %40 = arith.index_cast %c2_i32 : i32 to index
    %41 = memref.load %arg3[%c0_17, %40] : memref<2x5xf32, #tpu.memory_space<smem>>
    %42 = vector.broadcast %41 : f32 to vector<2x32xf32>
    %43 = arith.mulf %39, %42 : vector<2x32xf32>
    %44 = arith.addf %29, %43 : vector<2x32xf32>
    %c1_18 = arith.constant 1 : index
    %45 = arith.index_cast %c2_i32 : i32 to index
    %46 = memref.load %arg3[%c1_18, %45] : memref<2x5xf32, #tpu.memory_space<smem>>
    %47 = vector.broadcast %46 : f32 to vector<2x32xf32>
    %48 = arith.mulf %39, %47 : vector<2x32xf32>
    %49 = arith.addf %34, %48 : vector<2x32xf32>
    %c3_i32 = arith.constant 3 : i32
    %50 = arith.index_cast %c3_i32 : i32 to index
    %c0_19 = arith.constant 0 : index
    %c0_20 = arith.constant 0 : index
    %c0_21 = arith.constant 0 : index
    %51 = vector.load %arg2[%50, %c0_19, %c0_20, %c0_21] : memref<5x2x16x32xbf16, #tpu.memory_space<vmem>>, vector<1x2x16x32xbf16>
    %52 = vector.shape_cast %51 : vector<1x2x16x32xbf16> to vector<2x16x32xbf16>
    %53 = arith.extf %52 : vector<2x16x32xbf16> to vector<2x16x32xf32>
    %cst_22 = arith.constant dense<0.000000e+00> : vector<2x32xf32>
    %54 = vector.multi_reduction <add>, %53, %cst_22 [1] : vector<2x16x32xf32> to vector<2x32xf32>
    %c0_23 = arith.constant 0 : index
    %55 = arith.index_cast %c3_i32 : i32 to index
    %56 = memref.load %arg3[%c0_23, %55] : memref<2x5xf32, #tpu.memory_space<smem>>
    %57 = vector.broadcast %56 : f32 to vector<2x32xf32>
    %58 = arith.mulf %54, %57 : vector<2x32xf32>
    %59 = arith.addf %44, %58 : vector<2x32xf32>
    %c1_24 = arith.constant 1 : index
    %60 = arith.index_cast %c3_i32 : i32 to index
    %61 = memref.load %arg3[%c1_24, %60] : memref<2x5xf32, #tpu.memory_space<smem>>
    %62 = vector.broadcast %61 : f32 to vector<2x32xf32>
    %63 = arith.mulf %54, %62 : vector<2x32xf32>
    %64 = arith.addf %49, %63 : vector<2x32xf32>
    %c4_i32 = arith.constant 4 : i32
    %65 = arith.index_cast %c4_i32 : i32 to index
    %c0_25 = arith.constant 0 : index
    %c0_26 = arith.constant 0 : index
    %c0_27 = arith.constant 0 : index
    %66 = vector.load %arg2[%65, %c0_25, %c0_26, %c0_27] : memref<5x2x16x32xbf16, #tpu.memory_space<vmem>>, vector<1x2x16x32xbf16>
    %67 = vector.shape_cast %66 : vector<1x2x16x32xbf16> to vector<2x16x32xbf16>
    %68 = arith.extf %67 : vector<2x16x32xbf16> to vector<2x16x32xf32>
    %cst_28 = arith.constant dense<0.000000e+00> : vector<2x32xf32>
    %69 = vector.multi_reduction <add>, %68, %cst_28 [1] : vector<2x16x32xf32> to vector<2x32xf32>
    %c0_29 = arith.constant 0 : index
    %70 = arith.index_cast %c4_i32 : i32 to index
    %71 = memref.load %arg3[%c0_29, %70] : memref<2x5xf32, #tpu.memory_space<smem>>
    %72 = vector.broadcast %71 : f32 to vector<2x32xf32>
    %73 = arith.mulf %69, %72 : vector<2x32xf32>
    %74 = arith.addf %59, %73 : vector<2x32xf32>
    %c1_30 = arith.constant 1 : index
    %75 = arith.index_cast %c4_i32 : i32 to index
    %76 = memref.load %arg3[%c1_30, %75] : memref<2x5xf32, #tpu.memory_space<smem>>
    %77 = vector.broadcast %76 : f32 to vector<2x32xf32>
    %78 = arith.mulf %69, %77 : vector<2x32xf32>
    %79 = arith.addf %64, %78 : vector<2x32xf32>
    %c5_i32 = arith.constant 5 : i32
    %c0_31 = arith.constant 0 : index
    %c0_32 = arith.constant 0 : index
    %c0_33 = arith.constant 0 : index
    %c0_34 = arith.constant 0 : index
    %80 = vector.load %arg4[%c0_31, %c0_32, %c0_33, %c0_34] : memref<1x2x2x32xf32, #tpu.memory_space<vmem>>, vector<1x1x2x32xf32>
    %81 = vector.shape_cast %80 : vector<1x1x2x32xf32> to vector<2x32xf32>
    %82 = arith.addf %81, %74 : vector<2x32xf32>
    %c0_35 = arith.constant 0 : index
    %c0_36 = arith.constant 0 : index
    %c0_37 = arith.constant 0 : index
    %c0_38 = arith.constant 0 : index
    %83 = vector.load %arg4[%c0_35, %c0_36, %c0_37, %c0_38] : memref<1x2x2x32xf32, #tpu.memory_space<vmem>>, vector<1x1x2x32xf32>
    %84 = vector.shape_cast %83 : vector<1x1x2x32xf32> to vector<2x32xf32>
    %85 = vector.shape_cast %82 : vector<2x32xf32> to vector<1x1x2x32xf32>
    tpu.vector_store %arg4[%c0_35, %c0_36, %c0_37, %c0_38], %85 {strides = array<i32>} : memref<1x2x2x32xf32, #tpu.memory_space<vmem>>, vector<1x1x2x32xf32>,
    %c0_39 = arith.constant 0 : index
    %c1_40 = arith.constant 1 : index
    %c0_41 = arith.constant 0 : index
    %c0_42 = arith.constant 0 : index
    %86 = vector.load %arg4[%c0_39, %c1_40, %c0_41, %c0_42] : memref<1x2x2x32xf32, #tpu.memory_space<vmem>>, vector<1x1x2x32xf32>
    %87 = vector.shape_cast %86 : vector<1x1x2x32xf32> to vector<2x32xf32>
    %88 = arith.addf %87, %79 : vector<2x32xf32>
    %c0_43 = arith.constant 0 : index
    %c1_44 = arith.constant 1 : index
    %c0_45 = arith.constant 0 : index
    %c0_46 = arith.constant 0 : index
    %89 = vector.load %arg4[%c0_43, %c1_44, %c0_45, %c0_46] : memref<1x2x2x32xf32, #tpu.memory_space<vmem>>, vector<1x1x2x32xf32>
    %90 = vector.shape_cast %89 : vector<1x1x2x32xf32> to vector<2x32xf32>
    %91 = vector.shape_cast %88 : vector<2x32xf32> to vector<1x1x2x32xf32>
    tpu.vector_store %arg4[%c0_43, %c1_44, %c0_45, %c0_46], %91 {strides = array<i32>} : memref<1x2x2x32xf32, #tpu.memory_space<vmem>>, vector<1x1x2x32xf32>,
    return
  }
  func.func @transform_0(%arg0: i32, %arg1: i32) -> (i32, i32, i32, i32) {
    %c2_i32 = arith.constant 2 : i32
    %0 = arith.muli %arg0, %c2_i32 : i32
    %1 = arith.addi %0, %arg1 : i32
    %c0_i32 = arith.constant 0 : i32
    %c0_i32_0 = arith.constant 0 : i32
    %c0_i32_1 = arith.constant 0 : i32
    %c0_i32_2 = arith.constant 0 : i32
    return %c0_i32, %c0_i32_0, %1, %c0_i32_1 : i32, i32, i32, i32
  }
  func.func @transform_1(%arg0: i32, %arg1: i32) -> (i32, i32) {
    %c0_i32 = arith.constant 0 : i32
    %c0_i32_0 = arith.constant 0 : i32
    %c0_i32_1 = arith.constant 0 : i32
    return %c0_i32, %c0_i32_0 : i32, i32
  }
  func.func @transform_2(%arg0: i32, %arg1: i32) -> (i32, i32, i32, i32) {
    %c0_i32 = arith.constant 0 : i32
    %c0_i32_0 = arith.constant 0 : i32
    %c0_i32_1 = arith.constant 0 : i32
    %c0_i32_2 = arith.constant 0 : i32
    return %arg0, %c0_i32, %c0_i32_0, %c0_i32_1 : i32, i32, i32, i32
  }
}

</mosaic_0001>

<llo_original>
// kernel: tpu_custom_call.1
$region0: #{tpu_custom_call.1}
  #allocation0 [shape = 'u32[]', space=smem, size = 0x4, offset = 0x4, fixed_abs, tag = 'smem constant byte address 0x4 - core index']
  #allocation1 [shape = 'u32[144,128]{1,0:T(1,128)}', space=vmem, size = 0x12000, scoped, tag = 'internal scratch']
  %s0 = inlined_call_operand.vmem [shape: bf16[5,2,64,32], index: 0, kind: input, shape index: {}]
  %s1 = inlined_call_operand.vmem [shape: f32[2,5], index: 1, kind: input, shape index: {}]
  %s2 = inlined_call_operand.hbm [shape: f32[2,2,2,32], index: 2, kind: output, shape index: {}]
  %s3 = sld [smem:[#allocation0]]
  $region90: #{tpu_custom_call.1} parent=0
    _
  %s5 = ssub.s32 1, %s3
  %s6 = scalar_select 0, %s5, %s3
  $region1: #{tpu_custom_call.1} parent=0
    #allocation2 [shape = 'u8[81920]{0}', space=vmem, size = 0x14000, scoped, tag = 'input window, operand 0']
    #allocation3 [shape = 'u8[1024]{0}', space=smem, size = 0x400, scoped, tag = 'input window, operand 1, single buffered']
    #allocation4 [shape = 's32[2]{0}', space=sflag, size = 0x8, scoped, tag = 'scoped memory for tpu_custom_call.1']
    #allocation5 [shape = 's32[2]{0}', space=sflag, size = 0x8, scoped, tag = 'scoped memory for tpu_custom_call.1']
    #allocation6 [shape = 'u8[4096]{0}', space=vmem, size = 0x1000, scoped, tag = 'output window, operand 0']
    %7 = vsyncpa [#allocation5], 0
    %8 = vsyncpa [#allocation4], 0
    %s9 = scalar_lea.sflag [#allocation4], 1
    %10 = vsyncpa %s9, 0
    loop: start=0, step=1, limit=6
    $region2: #{tpu_custom_call.1} parent=1 // loop_pre_header
      _
    $region3: #{tpu_custom_call.1} parent=1 // loop_header
      %s12 = sphi 0, %s16
      %p13 = scmp.ge.s32.totalorder %s12, 6
      %s19 = sphi 0, %s31
      %s20 = sphi 0, %s27
      %s21 = sphi 0, %s19
      %s22 = sphi 0, %s20
      %s23 = sphi 0, %s21
      %s24 = sphi 0, %s22
      %s38 = sphi 0, %s40
      %s41 = sphi 0, %s38
      %s42 = sphi 0, %s41
      %s58 = sphi 0, %s42
      %s62 = sphi 0, %s62
      %s64 = sphi 0, %s62
      %s65 = sphi 0, %s64
      %s79 = sphi 0, %s65
      %s85 = sphi 0, %s87
      %s88 = sphi 0, %s85
      %s89 = sphi 0, %s88
      %s105 = sphi 0, %s89
    $region4: #{tpu_custom_call.1} parent=1 // loop_header_branch
      %15 = sbr.rel (%p13) target = $region8
    $region5: #{tpu_custom_call.1} parent=1 // loop_body
      %s17 = ssub.s32 %s12, 1
      %s18 = ssub.s32 %s12, 2
      %s25 = sadd.s32 1, %s20
      %p26 = scmp.ge.s32.totalorder %s25, 2
      %s27 = scalar_select %p26, 0, %s25
      %s28 = sadd.s32 1, %s19
      %s29 = scalar_select %p26, %s28, %s19
      %p30 = scmp.ge.s32.totalorder %s29, 2
      %s31 = scalar_select %p30, 0, %s29
      %s32 = smul.u32 %s19, 2
      %s33 = sadd.s32 %s32, %s20
      %s34 = smul.u32 %s31, 2
      %s35 = sadd.s32 %s34, %s27
      %s36 = ssub.s32 %s33, %s35
      %p37 = scmp.eq.s32.totalorder %s36, 0
      %s39 = sadd.s32 %s38, 1
      %s40 = scalar_select %p37, %s38, %s39
      %p43 = pneg %p37
      %p44 = scmp.eq.s32.totalorder %s12, 3
      %p45 = por %p43, %p44
      %p46 = scmp.ne.s32.totalorder %s38, %s41
      %p47 = scmp.eq.s32.totalorder %s12, 0
      %p48 = por %p46, %p47
      %p49 = scmp.ne.s32.totalorder %s38, %s41
      %p50 = scmp.eq.s32.totalorder %s17, 3
      %p51 = por %p49, %p50
      %p52 = scmp.ne.s32.totalorder %s41, %s42
      %p53 = scmp.eq.s32.totalorder %s17, 0
      %p54 = por %p52, %p53
      %p55 = scmp.ne.s32.totalorder %s41, %s42
      %p56 = scmp.eq.s32.totalorder %s18, 3
      %p57 = por %p55, %p56
      %p59 = scmp.ne.s32.totalorder %s42, %s58
      %p60 = scmp.eq.s32.totalorder %s18, 0
      %p61 = por %p59, %p60
      %s63 = sadd.s32 %s62, 1
      %p66 = scmp.eq.s32.totalorder %s12, 3
      %p67 = scmp.ne.s32.totalorder %s62, %s64
      %p68 = scmp.eq.s32.totalorder %s12, 0
      %p69 = por %p67, %p68
      %p70 = scmp.ne.s32.totalorder %s62, %s64
      %p71 = scmp.eq.s32.totalorder %s17, 3
      %p72 = por %p70, %p71
      %p73 = scmp.ne.s32.totalorder %s64, %s65
      %p74 = scmp.eq.s32.totalorder %s17, 0
      %p75 = por %p73, %p74
      %p76 = scmp.ne.s32.totalorder %s64, %s65
      %p77 = scmp.eq.s32.totalorder %s18, 3
      %p78 = por %p76, %p77
      %p80 = scmp.ne.s32.totalorder %s65, %s79
      %p81 = scmp.eq.s32.totalorder %s18, 0
      %p82 = por %p80, %p81
      %s83 = ssub.s32 %s19, %s31
      %p84 = scmp.eq.s32.totalorder %s83, 0
      %s86 = sadd.s32 %s85, 1
      %s87 = scalar_select %p84, %s85, %s86
      %p90 = pneg %p84
      %p91 = scmp.eq.s32.totalorder %s12, 3
      %p92 = por %p90, %p91
      %p93 = scmp.ne.s32.totalorder %s85, %s88
      %p94 = scmp.eq.s32.totalorder %s12, 0
      %p95 = por %p93, %p94
      %p96 = scmp.ne.s32.totalorder %s85, %s88
      %p97 = scmp.eq.s32.totalorder %s17, 3
      %p98 = por %p96, %p97
      %p99 = scmp.ne.s32.totalorder %s88, %s89
      %p100 = scmp.eq.s32.totalorder %s17, 0
      %p101 = por %p99, %p100
      %p102 = scmp.ne.s32.totalorder %s88, %s89
      %p103 = scmp.eq.s32.totalorder %s18, 3
      %p104 = por %p102, %p103
      %p106 = scmp.ne.s32.totalorder %s89, %s105
      %p107 = scmp.eq.s32.totalorder %s18, 0
      %p108 = por %p106, %p107
      %p109 = scmp.le.s32.totalorder 1, %s12
      %p110 = scmp.lt.s32.totalorder %s12, 5
      %p111 = pnand %p109, %p110
      %p112 = pneg %p111
      // Predicated region
      $region9: #{tpu_custom_call.1} parent=5 // pred_check
        _
      $region10: #{tpu_custom_call.1} parent=5 // pred_check_branch
        %114 = sbr.rel (%p111) target = $region12
      $region11: #{tpu_custom_call.1} parent=5 // pred_region
        %s115 = ssub.s32 %s12, 1
        // Predicated region
        $region13: #{tpu_custom_call.1} parent=11 // pred_check
          %p116 = pneg %p75
        $region14: #{tpu_custom_call.1} parent=11 // pred_check_branch
          %118 = sbr.rel (%p116) target = $region16
        $region15: #{tpu_custom_call.1} parent=11 // pred_region
          %s120 = ssub.s32 32, 32
          %121 = vsyncadd [#allocation5], %s120
          %s123 = sshll.u32 %s1, 4
          %s124 = int_to_ptr.vmem [resolvable:$true] %s123
          %126 = dma.vmem_to_smem %s124, 32, [#allocation3], [#allocation5]
        $region16: #{tpu_custom_call.1} parent=11 // pred_fallthru
          _
      $region12: #{tpu_custom_call.1} parent=5 // pred_fallthru
        _
      %p127 = scmp.lt.s32.totalorder %s12, 4
      // Predicated region
      $region17: #{tpu_custom_call.1} parent=5 // pred_check
        %p128 = pneg %p127
      $region18: #{tpu_custom_call.1} parent=5 // pred_check_branch
        %130 = sbr.rel (%p128) target = $region20
      $region19: #{tpu_custom_call.1} parent=5 // pred_region
        // Predicated region
        $region21: #{tpu_custom_call.1} parent=19 // pred_check
          %p131 = pneg %p48
        $region22: #{tpu_custom_call.1} parent=19 // pred_check_branch
          %133 = sbr.rel (%p131) target = $region24
        $region23: #{tpu_custom_call.1} parent=19 // pred_region
          %s134 = sand.u32 %s38, 1
          %s135 = sand.u32 %s38, 1
          %s136 = smul.addr %s135, 80
          %s137 = scalar_lea.vmem [#allocation2], %s136
          %s138 = smul.u32 %s19, 2
          %s139 = sadd.s32 %s138, %s20
          %s140 = smul.u32 2, %s139
          %s141 = smul.addr %s140, 4
          %s142 = scalar_lea.vmem %s0, %s141
          // Predicated region
          $region25: #{tpu_custom_call.1} parent=23 // pred_check
            _
          $region26: #{tpu_custom_call.1} parent=23 // pred_check_branch
            %144 = sbr.rel (0) target = $region28
          $region27: #{tpu_custom_call.1} parent=23 // pred_region
            // Predicated region
            $region29: #{tpu_custom_call.1} parent=27 // pred_check
              _
            $region30: #{tpu_custom_call.1} parent=27 // pred_check_branch
              %146 = sbr.rel target = $region32
            $region31: #{tpu_custom_call.1} parent=27 // pred_region
              // Predicated region
              $region44: #{tpu_custom_call.1} parent=31 // pred_check
                _
              $region45: #{tpu_custom_call.1} parent=31 // pred_check_branch
                %199 = sbr.rel (0) target = $region47
              $region46: #{tpu_custom_call.1} parent=31 // pred_region
                loop: start=0, step=1, limit=1
                $region48: #{tpu_custom_call.1} parent=46 // loop_pre_header
                  _
                $region49: #{tpu_custom_call.1} parent=46 // loop_header
                  %s201 = sphi 0, %s205
                  %p202 = scmp.ge.s32.totalorder %s201, 1
                  %s206 = sphi %s142, %s142
                  %s207 = sphi %s137, %s137
                $region50: #{tpu_custom_call.1} parent=46 // loop_header_branch
                  %204 = sbr.rel (%p202) target = $region54
                $region51: #{tpu_custom_call.1} parent=46 // loop_body
                  _
                $region52: #{tpu_custom_call.1} parent=46 // loop_footer
                  %s205 = sadd.s32 1, %s201
                $region53: #{tpu_custom_call.1} parent=46 // loop_footer_branch
                  %200 = sbr.rel target = $region49
                $region54: #{tpu_custom_call.1} parent=46 // loop_exit
                  _
                loop: start=0, step=1, limit=1
                $region55: #{tpu_custom_call.1} parent=46 // loop_pre_header
                  _
                $region56: #{tpu_custom_call.1} parent=46 // loop_header
                  %s210 = sphi 0, %s214
                  %p211 = scmp.ge.s32.totalorder %s210, 1
                  %s215 = sphi %s142, %s142
                  %s216 = sphi %s137, %s137
                $region57: #{tpu_custom_call.1} parent=46 // loop_header_branch
                  %213 = sbr.rel (%p211) target = $region61
                $region58: #{tpu_custom_call.1} parent=46 // loop_body
                  %v217 = vld [vmem:[%s215] sm:$0xf]
                  %218 = vst [vmem:[%s216] sm:$0xf] %v217
                  %v219 = vld [vmem:[%s215 + $0x4] sm:$0xf]
                  %220 = vst [vmem:[%s216 + $0x4] sm:$0xf] %v219
                  %v221 = vld [vmem:[%s215 + $0x20] sm:$0xf]
                  %222 = vst [vmem:[%s216 + $0x8] sm:$0xf] %v221
                  %v223 = vld [vmem:[%s215 + $0x24] sm:$0xf]
                  %224 = vst [vmem:[%s216 + $0xc] sm:$0xf] %v223
                  %v225 = vld [vmem:[%s215 + $0x40] sm:$0xf]
                  %226 = vst [vmem:[%s216 + $0x10] sm:$0xf] %v225
                  %v227 = vld [vmem:[%s215 + $0x44] sm:$0xf]
                  %228 = vst [vmem:[%s216 + $0x14] sm:$0xf] %v227
                  %v229 = vld [vmem:[%s215 + $0x60] sm:$0xf]
                  %230 = vst [vmem:[%s216 + $0x18] sm:$0xf] %v229
                  %v231 = vld [vmem:[%s215 + $0x64] sm:$0xf]
                  %232 = vst [vmem:[%s216 + $0x1c] sm:$0xf] %v231
                  %v233 = vld [vmem:[%s215 + $0x80] sm:$0xf]
                  %234 = vst [vmem:[%s216 + $0x20] sm:$0xf] %v233
                  %v235 = vld [vmem:[%s215 + $0x84] sm:$0xf]
                  %236 = vst [vmem:[%s216 + $0x24] sm:$0xf] %v235
                  %v237 = vld [vmem:[%s215 + $0xa0] sm:$0xf]
                  %238 = vst [vmem:[%s216 + $0x28] sm:$0xf] %v237
                  %v239 = vld [vmem:[%s215 + $0xa4] sm:$0xf]
                  %240 = vst [vmem:[%s216 + $0x2c] sm:$0xf] %v239
                  %v241 = vld [vmem:[%s215 + $0xc0] sm:$0xf]
                  %242 = vst [vmem:[%s216 + $0x30] sm:$0xf] %v241
                  %v243 = vld [vmem:[%s215 + $0xc4] sm:$0xf]
                  %244 = vst [vmem:[%s216 + $0x34] sm:$0xf] %v243
                  %v245 = vld [vmem:[%s215 + $0xe0] sm:$0xf]
                  %246 = vst [vmem:[%s216 + $0x38] sm:$0xf] %v245
                  %v247 = vld [vmem:[%s215 + $0xe4] sm:$0xf]
                  %248 = vst [vmem:[%s216 + $0x3c] sm:$0xf] %v247
                  %v249 = vld [vmem:[%s215 + $0x100] sm:$0xf]
                  %250 = vst [vmem:[%s216 + $0x40] sm:$0xf] %v249
                  %v251 = vld [vmem:[%s215 + $0x104] sm:$0xf]
                  %252 = vst [vmem:[%s216 + $0x44] sm:$0xf] %v251
                  %v253 = vld [vmem:[%s215 + $0x120] sm:$0xf]
                  %254 = vst [vmem:[%s216 + $0x48] sm:$0xf] %v253
                  %v255 = vld [vmem:[%s215 + $0x124] sm:$0xf]
                  %256 = vst [vmem:[%s216 + $0x4c] sm:$0xf] %v255
                $region59: #{tpu_custom_call.1} parent=46 // loop_footer
                  %s214 = sadd.s32 1, %s210
                $region60: #{tpu_custom_call.1} parent=46 // loop_footer_branch
                  %209 = sbr.rel target = $region56
                $region61: #{tpu_custom_call.1} parent=46 // loop_exit
                  _
              $region47: #{tpu_custom_call.1} parent=31 // pred_fallthru
                _
            $region32: #{tpu_custom_call.1} parent=27 // pred_fallthru
              _
            // Predicated region
            $region33: #{tpu_custom_call.1} parent=27 // pred_check
              _
            $region34: #{tpu_custom_call.1} parent=27 // pred_check_branch
              %148 = sbr.rel (0) target = $region36
            $region35: #{tpu_custom_call.1} parent=27 // pred_region
              loop: start=0, step=1, limit=1
              $region37: #{tpu_custom_call.1} parent=35 // loop_pre_header
                _
              $region38: #{tpu_custom_call.1} parent=35 // loop_header
                %s151 = sphi 0, %s155
                %p152 = scmp.ge.s32.totalorder %s151, 1
                %s156 = sphi %s142, %s142
                %s157 = sphi %s137, %s137
              $region39: #{tpu_custom_call.1} parent=35 // loop_header_branch
                %154 = sbr.rel (%p152) target = $region43
              $region40: #{tpu_custom_call.1} parent=35 // loop_body
                %v158 = vld [vmem:[%s156] sm:$0xf]
                %159 = vst [vmem:[%s157] sm:$0xf] %v158
                %v160 = vld [vmem:[%s156 + $0x4] sm:$0xf]
                %161 = vst [vmem:[%s157 + $0x4] sm:$0xf] %v160
                %v162 = vld [vmem:[%s156 + $0x20] sm:$0xf]
                %163 = vst [vmem:[%s157 + $0x8] sm:$0xf] %v162
                %v164 = vld [vmem:[%s156 + $0x24] sm:$0xf]
                %165 = vst [vmem:[%s157 + $0xc] sm:$0xf] %v164
                %v166 = vld [vmem:[%s156 + $0x40] sm:$0xf]
                %167 = vst [vmem:[%s157 + $0x10] sm:$0xf] %v166
                %v168 = vld [vmem:[%s156 + $0x44] sm:$0xf]
                %169 = vst [vmem:[%s157 + $0x14] sm:$0xf] %v168
                %v170 = vld [vmem:[%s156 + $0x60] sm:$0xf]
                %171 = vst [vmem:[%s157 + $0x18] sm:$0xf] %v170
                %v172 = vld [vmem:[%s156 + $0x64] sm:$0xf]
                %173 = vst [vmem:[%s157 + $0x1c] sm:$0xf] %v172
                %v174 = vld [vmem:[%s156 + $0x80] sm:$0xf]
                %175 = vst [vmem:[%s157 + $0x20] sm:$0xf] %v174
                %v176 = vld [vmem:[%s156 + $0x84] sm:$0xf]
                %177 = vst [vmem:[%s157 + $0x24] sm:$0xf] %v176
                %v178 = vld [vmem:[%s156 + $0xa0] sm:$0xf]
                %179 = vst [vmem:[%s157 + $0x28] sm:$0xf] %v178
                %v180 = vld [vmem:[%s156 + $0xa4] sm:$0xf]
                %181 = vst [vmem:[%s157 + $0x2c] sm:$0xf] %v180
                %v182 = vld [vmem:[%s156 + $0xc0] sm:$0xf]
                %183 = vst [vmem:[%s157 + $0x30] sm:$0xf] %v182
                %v184 = vld [vmem:[%s156 + $0xc4] sm:$0xf]
                %185 = vst [vmem:[%s157 + $0x34] sm:$0xf] %v184
                %v186 = vld [vmem:[%s156 + $0xe0] sm:$0xf]
                %187 = vst [vmem:[%s157 + $0x38] sm:$0xf] %v186
                %v188 = vld [vmem:[%s156 + $0xe4] sm:$0xf]
                %189 = vst [vmem:[%s157 + $0x3c] sm:$0xf] %v188
                %v190 = vld [vmem:[%s156 + $0x100] sm:$0xf]
                %191 = vst [vmem:[%s157 + $0x40] sm:$0xf] %v190
                %v192 = vld [vmem:[%s156 + $0x104] sm:$0xf]
                %193 = vst [vmem:[%s157 + $0x44] sm:$0xf] %v192
                %v194 = vld [vmem:[%s156 + $0x120] sm:$0xf]
                %195 = vst [vmem:[%s157 + $0x48] sm:$0xf] %v194
                %v196 = vld [vmem:[%s156 + $0x124] sm:$0xf]
                %197 = vst [vmem:[%s157 + $0x4c] sm:$0xf] %v196
              $region41: #{tpu_custom_call.1} parent=35 // loop_footer
                %s155 = sadd.s32 1, %s151
              $region42: #{tpu_custom_call.1} parent=35 // loop_footer_branch
                %150 = sbr.rel target = $region38
              $region43: #{tpu_custom_call.1} parent=35 // loop_exit
                _
            $region36: #{tpu_custom_call.1} parent=27 // pred_fallthru
              _
          $region28: #{tpu_custom_call.1} parent=23 // pred_fallthru
            _
          %257 = vnop
        $region24: #{tpu_custom_call.1} parent=19 // pred_fallthru
          _
      $region20: #{tpu_custom_call.1} parent=5 // pred_fallthru
        _
      %p258 = scmp.le.s32.totalorder 1, %s12
      %p259 = scmp.lt.s32.totalorder %s12, 5
      %p260 = pnand %p258, %p259
      %p261 = pneg %p260
      // Predicated region
      $region62: #{tpu_custom_call.1} parent=5 // pred_check
        _
      $region63: #{tpu_custom_call.1} parent=5 // pred_check_branch
        %263 = sbr.rel (%p260) target = $region65
      $region64: #{tpu_custom_call.1} parent=5 // pred_region
        %s264 = ssub.s32 %s12, 1
        %s265 = sand.u32 %s41, 1
        %s266 = sand.u32 %s41, 1
        %s267 = smul.addr %s266, 80
        %s268 = scalar_lea.vmem [#allocation2], %s267
        // Predicated region
        $region66: #{tpu_custom_call.1} parent=64 // pred_check
          %p269 = pneg %p54
        $region67: #{tpu_custom_call.1} parent=64 // pred_check_branch
          %271 = sbr.rel (%p269) target = $region69
        $region68: #{tpu_custom_call.1} parent=64 // pred_region
          _
        $region69: #{tpu_custom_call.1} parent=64 // pred_fallthru
          _
        // Predicated region
        $region70: #{tpu_custom_call.1} parent=64 // pred_check
          %p272 = pneg %p75
        $region71: #{tpu_custom_call.1} parent=64 // pred_check_branch
          %274 = sbr.rel (%p272) target = $region73
        $region72: #{tpu_custom_call.1} parent=64 // pred_region
          %275 = dma.done [#allocation5], 32
        $region73: #{tpu_custom_call.1} parent=64 // pred_fallthru
          _
        %276 = sfence
        %s277 = sand.u32 %s41, 1
        %s278 = sand.u32 %s41, 1
        %s279 = smul.addr %s278, 80
        %s280 = scalar_lea.vmem [#allocation2], %s279
        %p281 = pneg %p54
        %p282 = pneg %p51
        %p283 = pneg %p75
        %p284 = pneg %p72
        %p285 = pneg %p101
        %p286 = pneg %p98
        %s287 = sand.u32 %s88, 1
        %s288 = scalar_lea.sflag [#allocation4], %s287
        %s289 = sand.u32 %s88, 1
        %s290 = smul.addr %s289, 4
        %s291 = scalar_lea.vmem [#allocation6], %s290
        %s292 = smul.u32 %s21, 2
        %s293 = sadd.s32 %s292, %s22
        %s294 = smul.u32 2, %s293
        %p295 = scmp.eq.s32.totalorder %s22, 0
        // Predicated region
        $region74: #{tpu_custom_call.1} parent=64 // pred_check
          %p296 = pneg %p295
        $region75: #{tpu_custom_call.1} parent=64 // pred_check_branch
          %298 = sbr.rel (%p296) target = $region77
        $region76: #{tpu_custom_call.1} parent=64 // pred_region
          %vm299 = vcmask 254976
          %300 = vst.msk [vmem:[%s291] sm:$0x3] %vm299, 0.0
          %301 = vst.msk [vmem:[%s291 + $0x2] sm:$0x3] %vm299, 0.0
        $region77: #{tpu_custom_call.1} parent=64 // pred_fallthru
          _
        %v302 = vld [vmem:[%s268] sm:$0xf]
        %v303 = vld [vmem:[%s268 + $0x4] sm:$0xf]
        %v304 = vld [vmem:[%s268 + $0x8] sm:$0xf]
        %v305 = vld [vmem:[%s268 + $0xc] sm:$0xf]
        %v306 = vunpack.c.l.bf16 %v302
        %v307 = vunpack.c.l.bf16 %v303
        %v308 = vunpack.c.l.bf16 %v304
        %v309 = vunpack.c.l.bf16 %v305
        %vm310 = vcmask 261120
        %v311 = vsel %vm310, %v306, 0.0
        %v312 = vsel %vm310, %v307, 0.0
        %v313 = vadd.f32 %v311, %v312
        %v314 = vrot.slane %v313, 4
        %v315 = vadd.f32 %v313, %v314
        %v316 = vrot.slane %v315, 2
        %v317 = vadd.f32 %v315, %v316
        %v318 = vrot.slane %v317, 1
        %v319 = vadd.f32 %v317, %v318
        %v320 = vsel %vm310, %v308, 0.0
        %v321 = vsel %vm310, %v309, 0.0
        %v322 = vadd.f32 %v320, %v321
        %v323 = vrot.slane %v322, 4
        %v324 = vadd.f32 %v322, %v323
        %v325 = vrot.slane %v324, 2
        %v326 = vadd.f32 %v324, %v325
        %v327 = vrot.slane %v326, 1
        %v328 = vadd.f32 %v326, %v327
        %s329 = sld [smem:[#allocation3]]
        %v330 = vstv %s329
        %v331 = vmul.f32 %v319, %v330
        %v332 = vmul.f32 %v328, %v330
        %v333 = vadd.f32 %v331, 0.0
        %v334 = vadd.f32 %v332, 0.0
        %s335 = sld [smem:[#allocation3 + $0x80]]
        %v336 = vstv %s335
        %v337 = vmul.f32 %v319, %v336
        %v338 = vmul.f32 %v328, %v336
        %v339 = vadd.f32 %v337, 0.0
        %v340 = vadd.f32 %v338, 0.0
        %s341 = scalar_lea.vmem %s268, 16 [#allocation2]
        %v342 = vld [vmem:[%s341] sm:$0xf]
        %v343 = vld [vmem:[%s341 + $0x4] sm:$0xf]
        %v344 = vld [vmem:[%s341 + $0x8] sm:$0xf]
        %v345 = vld [vmem:[%s341 + $0xc] sm:$0xf]
        %v346 = vunpack.c.l.bf16 %v342
        %v347 = vunpack.c.l.bf16 %v343
        %v348 = vunpack.c.l.bf16 %v344
        %v349 = vunpack.c.l.bf16 %v345
        %v350 = vsel %vm310, %v346, 0.0
        %v351 = vsel %vm310, %v347, 0.0
        %v352 = vadd.f32 %v350, %v351
        %v353 = vrot.slane %v352, 4
        %v354 = vadd.f32 %v352, %v353
        %v355 = vrot.slane %v354, 2
        %v356 = vadd.f32 %v354, %v355
        %v357 = vrot.slane %v356, 1
        %v358 = vadd.f32 %v356, %v357
        %v359 = vsel %vm310, %v348, 0.0
        %v360 = vsel %vm310, %v349, 0.0
        %v361 = vadd.f32 %v359, %v360
        %v362 = vrot.slane %v361, 4
        %v363 = vadd.f32 %v361, %v362
        %v364 = vrot.slane %v363, 2
        %v365 = vadd.f32 %v363, %v364
        %v366 = vrot.slane %v365, 1
        %v367 = vadd.f32 %v365, %v366
        %s368 = sld [smem:[#allocation3 + $0x1]]
        %v369 = vstv %s368
        %v370 = vmul.f32 %v358, %v369
        %v371 = vmul.f32 %v367, %v369
        %v372 = vadd.f32 %v333, %v370
        %v373 = vadd.f32 %v334, %v371
        %s374 = sld [smem:[#allocation3 + $0x81]]
        %v375 = vstv %s374
        %v376 = vmul.f32 %v358, %v375
        %v377 = vmul.f32 %v367, %v375
        %v378 = vadd.f32 %v339, %v376
        %v379 = vadd.f32 %v340, %v377
        %s380 = scalar_lea.vmem %s268, 32 [#allocation2]
        %v381 = vld [vmem:[%s380] sm:$0xf]
        %v382 = vld [vmem:[%s380 + $0x4] sm:$0xf]
        %v383 = vld [vmem:[%s380 + $0x8] sm:$0xf]
        %v384 = vld [vmem:[%s380 + $0xc] sm:$0xf]
        %v385 = vunpack.c.l.bf16 %v381
        %v386 = vunpack.c.l.bf16 %v382
        %v387 = vunpack.c.l.bf16 %v383
        %v388 = vunpack.c.l.bf16 %v384
        %v389 = vsel %vm310, %v385, 0.0
        %v390 = vsel %vm310, %v386, 0.0
        %v391 = vadd.f32 %v389, %v390
        %v392 = vrot.slane %v391, 4
        %v393 = vadd.f32 %v391, %v392
        %v394 = vrot.slane %v393, 2
        %v395 = vadd.f32 %v393, %v394
        %v396 = vrot.slane %v395, 1
        %v397 = vadd.f32 %v395, %v396
        %v398 = vsel %vm310, %v387, 0.0
        %v399 = vsel %vm310, %v388, 0.0
        %v400 = vadd.f32 %v398, %v399
        %v401 = vrot.slane %v400, 4
        %v402 = vadd.f32 %v400, %v401
        %v403 = vrot.slane %v402, 2
        %v404 = vadd.f32 %v402, %v403
        %v405 = vrot.slane %v404, 1
        %v406 = vadd.f32 %v404, %v405
        %s407 = sld [smem:[#allocation3 + $0x2]]
        %v408 = vstv %s407
        %v409 = vmul.f32 %v397, %v408
        %v410 = vmul.f32 %v406, %v408
        %v411 = vadd.f32 %v372, %v409
        %v412 = vadd.f32 %v373, %v410
        %s413 = sld [smem:[#allocation3 + $0x82]]
        %v414 = vstv %s413
        %v415 = vmul.f32 %v397, %v414
        %v416 = vmul.f32 %v406, %v414
        %v417 = vadd.f32 %v378, %v415
        %v418 = vadd.f32 %v379, %v416
        %s419 = scalar_lea.vmem %s268, 48 [#allocation2]
        %v420 = vld [vmem:[%s419] sm:$0xf]
        %v421 = vld [vmem:[%s419 + $0x4] sm:$0xf]
        %v422 = vld [vmem:[%s419 + $0x8] sm:$0xf]
        %v423 = vld [vmem:[%s419 + $0xc] sm:$0xf]
        %v424 = vunpack.c.l.bf16 %v420
        %v425 = vunpack.c.l.bf16 %v421
        %v426 = vunpack.c.l.bf16 %v422
        %v427 = vunpack.c.l.bf16 %v423
        %v428 = vsel %vm310, %v424, 0.0
        %v429 = vsel %vm310, %v425, 0.0
        %v430 = vadd.f32 %v428, %v429
        %v431 = vrot.slane %v430, 4
        %v432 = vadd.f32 %v430, %v431
        %v433 = vrot.slane %v432, 2
        %v434 = vadd.f32 %v432, %v433
        %v435 = vrot.slane %v434, 1
        %v436 = vadd.f32 %v434, %v435
        %v437 = vsel %vm310, %v426, 0.0
        %v438 = vsel %vm310, %v427, 0.0
        %v439 = vadd.f32 %v437, %v438
        %v440 = vrot.slane %v439, 4
        %v441 = vadd.f32 %v439, %v440
        %v442 = vrot.slane %v441, 2
        %v443 = vadd.f32 %v441, %v442
        %v444 = vrot.slane %v443, 1
        %v445 = vadd.f32 %v443, %v444
        %s446 = sld [smem:[#allocation3 + $0x3]]
        %v447 = vstv %s446
        %v448 = vmul.f32 %v436, %v447
        %v449 = vmul.f32 %v445, %v447
        %v450 = vadd.f32 %v411, %v448
        %v451 = vadd.f32 %v412, %v449
        %s452 = sld [smem:[#allocation3 + $0x83]]
        %v453 = vstv %s452
        %v454 = vmul.f32 %v436, %v453
        %v455 = vmul.f32 %v445, %v453
        %v456 = vadd.f32 %v417, %v454
        %v457 = vadd.f32 %v418, %v455
        %s458 = scalar_lea.vmem %s268, 64 [#allocation2]
        %v459 = vld [vmem:[%s458] sm:$0xf]
        %v460 = vld [vmem:[%s458 + $0x4] sm:$0xf]
        %v461 = vld [vmem:[%s458 + $0x8] sm:$0xf]
        %v462 = vld [vmem:[%s458 + $0xc] sm:$0xf]
        %v463 = vunpack.c.l.bf16 %v459
        %v464 = vunpack.c.l.bf16 %v460
        %v465 = vunpack.c.l.bf16 %v461
        %v466 = vunpack.c.l.bf16 %v462
        %v467 = vsel %vm310, %v463, 0.0
        %v468 = vsel %vm310, %v464, 0.0
        %v469 = vadd.f32 %v467, %v468
        %v470 = vrot.slane %v469, 4
        %v471 = vadd.f32 %v469, %v470
        %v472 = vrot.slane %v471, 2
        %v473 = vadd.f32 %v471, %v472
        %v474 = vrot.slane %v473, 1
        %v475 = vadd.f32 %v473, %v474
        %v476 = vsel %vm310, %v465, 0.0
        %v477 = vsel %vm310, %v466, 0.0
        %v478 = vadd.f32 %v476, %v477
        %v479 = vrot.slane %v478, 4
        %v480 = vadd.f32 %v478, %v479
        %v481 = vrot.slane %v480, 2
        %v482 = vadd.f32 %v480, %v481
        %v483 = vrot.slane %v482, 1
        %v484 = vadd.f32 %v482, %v483
        %s485 = sld [smem:[#allocation3 + $0x4]]
        %v486 = vstv %s485
        %v487 = vmul.f32 %v475, %v486
        %v488 = vmul.f32 %v484, %v486
        %v489 = vadd.f32 %v450, %v487
        %v490 = vadd.f32 %v451, %v488
        %s491 = sld [smem:[#allocation3 + $0x84]]
        %v492 = vstv %s491
        %v493 = vmul.f32 %v475, %v492
        %v494 = vmul.f32 %v484, %v492
        %v495 = vadd.f32 %v456, %v493
        %v496 = vadd.f32 %v457, %v494
        %v497 = vld [vmem:[%s291] sm:$0x3]
        %vm500 = vcmask 1041409
        %v501 = vsel %vm500, %v490, %v489
        %v503 = vadd.f32 %v497, %v501
        %vm504 = vcmask 254976
        %505 = vst.msk [vmem:[%s291] sm:$0x3] %vm504, %v503
        %s506 = scalar_lea.vmem %s291, 2 [#allocation6]
        %v507 = vld [vmem:[%s506] sm:$0x3]
        %v510 = vsel %vm500, %v496, %v495
        %v512 = vadd.f32 %v507, %v510
        %513 = vst.msk [vmem:[%s506] sm:$0x3] %vm504, %v512
        %s514 = sand.u32 %s88, 1
        %s515 = scalar_lea.sflag [#allocation4], %s514
        %s516 = sand.u32 %s88, 1
        %s517 = smul.addr %s516, 4
        %s518 = scalar_lea.vmem [#allocation6], %s517
        // Predicated region
        $region78: #{tpu_custom_call.1} parent=64 // pred_check
          %p519 = pneg %p98
        $region79: #{tpu_custom_call.1} parent=64 // pred_check_branch
          %521 = sbr.rel (%p519) target = $region81
        $region80: #{tpu_custom_call.1} parent=64 // pred_region
          %s523 = ssub.s32 64, 64
          %524 = vsyncadd %s515, %s523
          %s525 = smul.addr %s21, 2
          %s526 = smul.addr %s525, 32
          %s527 = scalar_lea.hbm %s2, %s526
          %s528 = sshll.u32 %s518, 4
          %s529 = int_to_ptr.vmem [resolvable:$true] %s528
          %534 = dma.vmem_to_hbm [thread:$0]  %s529, 64, %s527, %s515, 32, 32, 2
        $region81: #{tpu_custom_call.1} parent=64 // pred_fallthru
          _
      $region65: #{tpu_custom_call.1} parent=5 // pred_fallthru
        _
      %p535 = scmp.le.s32.totalorder 2, %s12
      // Predicated region
      $region82: #{tpu_custom_call.1} parent=5 // pred_check
        %p536 = pneg %p535
      $region83: #{tpu_custom_call.1} parent=5 // pred_check_branch
        %538 = sbr.rel (%p536) target = $region85
      $region84: #{tpu_custom_call.1} parent=5 // pred_region
        %s539 = ssub.s32 %s12, 2
        // Predicated region
        $region86: #{tpu_custom_call.1} parent=84 // pred_check
          %p540 = pneg %p104
        $region87: #{tpu_custom_call.1} parent=84 // pred_check_branch
          %542 = sbr.rel (%p540) target = $region89
        $region88: #{tpu_custom_call.1} parent=84 // pred_region
          %s543 = sand.u32 %s89, 1
          %s544 = scalar_lea.sflag [#allocation4], %s543
          %s545 = sand.u32 %s89, 1
          %s546 = smul.addr %s545, 4
          %s547 = scalar_lea.vmem [#allocation6], %s546
          %548 = dma.done %s544, 64
        $region89: #{tpu_custom_call.1} parent=84 // pred_fallthru
          _
      $region85: #{tpu_custom_call.1} parent=5 // pred_fallthru
        _
    $region6: #{tpu_custom_call.1} parent=1 // loop_footer
      %s16 = sadd.s32 1, %s12
    $region7: #{tpu_custom_call.1} parent=1 // loop_footer_branch
      %11 = sbr.rel target = $region3
    $region8: #{tpu_custom_call.1} parent=1 // loop_exit
      _
    %549 = vsyncpa [#allocation4], 1
    %s550 = scalar_lea.sflag [#allocation4], 1
    %551 = vsyncpa %s550, 1
    %552 = vsyncpa [#allocation5], 1
    %s553 = scalar_lea.sflag [#allocation5], 1
    %554 = vsyncpa %s553, 1

</llo_original>
